<compile_context>
chip_gen: v5e
topology: v5e:2x2
jax: 0.10.0
libtpu: 0.0.40
codegen_flags: <defaults>
</compile_context>

<pallas_src>
import functools

import jax
import jax.numpy as jnp
from jax.experimental import pallas as pl
from jax.experimental.pallas import tpu as pltpu


# ---------------------------------------------------------------------------
# Pallas kernel
# ---------------------------------------------------------------------------
def _group_bn_kernel(x_ref, gamma_ref, beta_ref, o_ref, *, eps):
    """Fused group statistics + normalization + per-channel affine.

    x_ref:     (Nb, Gb, L)  Nb samples, Gb groups, L = (C*H*W)//G elems/group
    gamma_ref: (Gb, L)      per-channel gamma pre-broadcast onto the group view
    beta_ref:  (Gb, L)      per-channel beta  pre-broadcast onto the group view
    o_ref:     (Nb, Gb, L)
    """
    x = x_ref[...].astype(jnp.float32)                       # (Nb, Gb, L)
    l = x.shape[-1]

    mean = jnp.mean(x, axis=-1, keepdims=True)                # (Nb, Gb, 1)
    d = x - mean
    # torch.std default is the unbiased estimator (divide by n-1); the
    # two-pass form avoids cancellation of the sum-of-squares formula.
    var = jnp.sum(d * d, axis=-1, keepdims=True) * (1.0 / (l - 1))
    inv = 1.0 / (jnp.sqrt(var) + eps)                         # eps added to std

    o_ref[...] = (d * inv * gamma_ref[...] + beta_ref[...]).astype(o_ref.dtype)


# ---------------------------------------------------------------------------
# Tile selection (generation-aware VMEM budget)
# ---------------------------------------------------------------------------
def _choose_tiles(n, g, l, itemsize, vmem_budget):
    """Pick (Nb, Gb) and return them together with an estimated VMEM usage."""

    def usage(nb, gb):
        blk = nb * gb * l
        # double-buffered input + output HBM blocks (I/O dtype)
        # + ~3 block-sized f32 temporaries (f32 copy, x-mean, scaled product)
        # + gamma/beta residency + fudge.
        return 4 * blk * itemsize + 3 * blk * 4 + 4 * gb * l * 4 + (2 << 20)

    if usage(1, g) <= vmem_budget:
        # Whole samples fit: batch as many per block as budget / the ~8 MiB
        # sweet spot allows, keeping >= ~4 grid steps for pipelining/megacore.
        fixed = 4 * g * l * 4 + (2 << 20)
        per_sample = g * l * (4 * itemsize + 12)
        nb_budget = max(1, (vmem_budget - fixed) // per_sample)
        nb_size = max(1, (8 << 20) // (g * l * 4))
        nb = int(max(1, min(n, nb_budget, nb_size, max(1, n // 4))))
        while n % nb:                      # avoid partial batch blocks
            nb -= 1
        return nb, g, usage(nb, g)

    # A single sample exceeds the budget: tile the (independent) group axis.
    # The block's second-to-last dim must be a multiple of 8 (or the full G).
    candidates = [d for d in range(8, g, 8) if g % d == 0]
    for gb in sorted(candidates, reverse=True):
        if usage(1, gb) <= vmem_budget:
            return 1, gb, usage(1, gb)
    # TODO(synk): if even a (1, 8, L) tile does not fit in VMEM the group
    # itself would need splitting (two-pass stats kernel); not handled here.
    gb = min(candidates) if candidates else g
    return 1, gb, usage(1, gb)


# ---------------------------------------------------------------------------
# Wrapper
# ---------------------------------------------------------------------------
def group_batchnorm_2d(x_nchw, gamma, beta, *, group_num=16, eps=1e-10):
    """GroupBatchnorm2d forward. x_nchw: (N, C, H, W) -> (N, C, H, W)."""
    n, c, h, w = x_nchw.shape
    assert c >= group_num
    hw = h * w
    # Same requirement as torch's view(N, G, -1).
    assert (c * hw) % group_num == 0, "C*H*W must be divisible by group_num"
    g = group_num
    l = (c * hw) // g
    assert l > 1, "unbiased std needs more than one element per group"

    # Free row-major views, identical to the PyTorch .view calls.
    x3 = x_nchw.reshape(n, g, l)
    gamma_f = jnp.asarray(gamma, jnp.float32).reshape(c, 1)
    beta_f = jnp.asarray(beta, jnp.float32).reshape(c, 1)
    # Per-channel params broadcast onto the (G, L) group view (built once,
    # VMEM-resident inside the kernel via a constant index_map).
    gamma_l = jnp.broadcast_to(gamma_f, (c, hw)).reshape(g, l)
    beta_l = jnp.broadcast_to(beta_f, (c, hw)).reshape(g, l)

    # Generation-aware VMEM budget (v7x: 64 MiB per TC, v5e/v6e: 128 MiB).
    try:
        vmem_cap = int(pltpu.get_tpu_info().vmem_capacity_bytes)
    except Exception:  # conservative fallback works on every generation
        vmem_cap = 64 * 1024 * 1024
    vmem_budget = int(vmem_cap * 0.7)

    itemsize = jnp.dtype(x_nchw.dtype).itemsize
    nb, gb, usage_bytes = _choose_tiles(n, g, l, itemsize, vmem_budget)
    vmem_limit = int(max(16 << 20,
                         min(int(0.9 * vmem_cap), usage_bytes + (16 << 20))))

    total = n * c * hw
    cost = pl.CostEstimate(
        flops=7 * total,
        transcendentals=n * g,
        bytes_accessed=2 * total * itemsize + 2 * c * hw * 4,
    )

    kernel = functools.partial(_group_bn_kernel, eps=eps)
    out3 = pl.pallas_call(
        kernel,
        out_shape=jax.ShapeDtypeStruct((n, g, l), x_nchw.dtype),
        grid=(n // nb, g // gb),
        in_specs=[
            pl.BlockSpec((nb, gb, l), lambda i, j: (i, j, 0)),
            pl.BlockSpec((gb, l), lambda i, j: (j, 0)),
            pl.BlockSpec((gb, l), lambda i, j: (j, 0)),
        ],
        out_specs=pl.BlockSpec((nb, gb, l), lambda i, j: (i, j, 0)),
        compiler_params=pltpu.CompilerParams(
            dimension_semantics=("parallel", "parallel"),
            vmem_limit_bytes=vmem_limit,
        ),
        cost_estimate=cost,
    )(x3, gamma_l, beta_l)
    return out3.reshape(n, c, h, w)


# ---------------------------------------------------------------------------
# Pure-JAX reference (matches the PyTorch module, torch.std unbiased)
# ---------------------------------------------------------------------------
def group_batchnorm_2d_reference(x, gamma, beta, *, group_num=16, eps=1e-10):
    n, c, h, w = x.shape
    xg = x.reshape(n, group_num, -1)
    mean = xg.mean(axis=2, keepdims=True)
    std = jnp.sqrt(xg.var(axis=2, ddof=1, keepdims=True))
    xg = (xg - mean) / (std + eps)
    xg = xg.reshape(n, c, h, w)
    return xg * gamma.reshape(1, c, 1, 1) + beta.reshape(1, c, 1, 1)


# ---------------------------------------------------------------------------
if __name__ == "__main__":
    key = jax.random.PRNGKey(0)
    kx, kg = jax.random.split(key)

    N, C, H, W = 2, 32, 16, 16
    GROUPS = 16
    EPS = 1e-10

    x = jax.random.normal(kx, (N, C, H, W), jnp.float32)
    gamma = jax.random.normal(kg, (C, 1, 1), jnp.float32)   # nn.Parameter(randn)
    beta = jnp.zeros((C, 1, 1), jnp.float32)                # nn.Parameter(zeros)

    fwd = jax.jit(functools.partial(group_batchnorm_2d, group_num=GROUPS, eps=EPS))
    out = jax.block_until_ready(fwd(x, gamma, beta))

    ref = jax.block_until_ready(
        group_batchnorm_2d_reference(x, gamma, beta, group_num=GROUPS, eps=EPS)
    )
    assert out.shape == ref.shape == (N, C, H, W), (out.shape, ref.shape)
    max_err = float(jnp.max(jnp.abs(out - ref)))
    assert max_err < 1e-4, f"max abs err too large: {max_err}"

    print("KERNEL_OK")
</pallas_src>

<mosaic_0001>
module attributes {stable_mosaic.version = 11 : i64} {
  func.func @_group_bn_kernel(%arg0: i32, %arg1: i32, %arg2: memref<1x16x512xf32, #tpu.memory_space<vmem>>, %arg3: memref<16x512xf32, #tpu.memory_space<vmem>>, %arg4: memref<16x512xf32, #tpu.memory_space<vmem>>, %arg5: memref<1x16x512xf32, #tpu.memory_space<vmem>>) attributes {dimension_semantics = [#tpu.dimension_semantics<parallel>, #tpu.dimension_semantics<parallel>], iteration_bounds = array<i64: 2, 1>, scalar_prefetch = 0 : i64, scratch_operands = 0 : i64, tpu.core_type = #tpu.core_type<tc>, window_params = [{transform_indices = @transform_0, window_bounds = array<i64: 1, 16, 512>}, {transform_indices = @transform_1, window_bounds = array<i64: 16, 512>}, {transform_indices = @transform_2, window_bounds = array<i64: 16, 512>}, {transform_indices = @transform_3, window_bounds = array<i64: 1, 16, 512>}]} {
    %c0 = arith.constant 0 : index
    %c0_0 = arith.constant 0 : index
    %c0_1 = arith.constant 0 : index
    %0 = vector.load %arg2[%c0, %c0_0, %c0_1] : memref<1x16x512xf32, #tpu.memory_space<vmem>>, vector<1x16x512xf32>
    %cst = arith.constant dense<0.000000e+00> : vector<1x16xf32>
    %1 = vector.multi_reduction <add>, %0, %cst [2] : vector<1x16x512xf32> to vector<1x16xf32>
    %2 = vector.shape_cast %1 : vector<1x16xf32> to vector<1x16x1xf32>
    %cst_2 = arith.constant 5.120000e+02 : f32
    %3 = vector.broadcast %cst_2 : f32 to vector<1x16x1xf32>
    %4 = arith.divf %2, %3 : vector<1x16x1xf32>
    %5 = vector.broadcast %4 : vector<1x16x1xf32> to vector<1x16x512xf32>
    %6 = arith.subf %0, %5 : vector<1x16x512xf32>
    %7 = arith.mulf %6, %6 : vector<1x16x512xf32>
    %cst_3 = arith.constant dense<0.000000e+00> : vector<1x16xf32>
    %8 = vector.multi_reduction <add>, %7, %cst_3 [2] : vector<1x16x512xf32> to vector<1x16xf32>
    %9 = vector.shape_cast %8 : vector<1x16xf32> to vector<1x16x1xf32>
    %cst_4 = arith.constant 0.00195694715 : f32
    %10 = vector.broadcast %cst_4 : f32 to vector<1x16x1xf32>
    %11 = arith.mulf %9, %10 : vector<1x16x1xf32>
    %12 = math.sqrt %11 : vector<1x16x1xf32>
    %cst_5 = arith.constant 1.000000e-10 : f32
    %13 = vector.broadcast %cst_5 : f32 to vector<1x16x1xf32>
    %14 = arith.addf %12, %13 : vector<1x16x1xf32>
    %cst_6 = arith.constant 1.000000e+00 : f32
    %15 = vector.broadcast %cst_6 : f32 to vector<1x16x1xf32>
    %16 = arith.divf %15, %14 : vector<1x16x1xf32>
    %17 = vector.broadcast %16 : vector<1x16x1xf32> to vector<1x16x512xf32>
    %18 = arith.mulf %6, %17 : vector<1x16x512xf32>
    %c0_7 = arith.constant 0 : index
    %c0_8 = arith.constant 0 : index
    %19 = vector.load %arg3[%c0_7, %c0_8] : memref<16x512xf32, #tpu.memory_space<vmem>>, vector<16x512xf32>
    %20 = vector.shape_cast %19 : vector<16x512xf32> to vector<1x16x512xf32>
    %21 = arith.mulf %18, %20 : vector<1x16x512xf32>
    %c0_9 = arith.constant 0 : index
    %c0_10 = arith.constant 0 : index
    %22 = vector.load %arg4[%c0_9, %c0_10] : memref<16x512xf32, #tpu.memory_space<vmem>>, vector<16x512xf32>
    %23 = vector.shape_cast %22 : vector<16x512xf32> to vector<1x16x512xf32>
    %24 = arith.addf %21, %23 : vector<1x16x512xf32>
    %c0_11 = arith.constant 0 : index
    %c0_12 = arith.constant 0 : index
    %c0_13 = arith.constant 0 : index
    %25 = vector.load %arg5[%c0_11, %c0_12, %c0_13] : memref<1x16x512xf32, #tpu.memory_space<vmem>>, vector<1x16x512xf32>
    tpu.vector_store %arg5[%c0_11, %c0_12, %c0_13], %24 {strides = array<i32>} : memref<1x16x512xf32, #tpu.memory_space<vmem>>, vector<1x16x512xf32>,
    return
  }
  func.func @transform_0(%arg0: i32, %arg1: i32) -> (i32, i32, i32) {
    %c0_i32 = arith.constant 0 : i32
    %c0_i32_0 = arith.constant 0 : i32
    return %arg0, %arg1, %c0_i32 : i32, i32, i32
  }
  func.func @transform_1(%arg0: i32, %arg1: i32) -> (i32, i32) {
    %c0_i32 = arith.constant 0 : i32
    %c0_i32_0 = arith.constant 0 : i32
    return %arg1, %c0_i32 : i32, i32
  }
  func.func @transform_2(%arg0: i32, %arg1: i32) -> (i32, i32) {
    %c0_i32 = arith.constant 0 : i32
    %c0_i32_0 = arith.constant 0 : i32
    return %arg1, %c0_i32 : i32, i32
  }
  func.func @transform_3(%arg0: i32, %arg1: i32) -> (i32, i32, i32) {
    %c0_i32 = arith.constant 0 : i32
    %c0_i32_0 = arith.constant 0 : i32
    return %arg0, %arg1, %c0_i32 : i32, i32, i32
  }
}

</mosaic_0001>

<llo_original>
// kernel: group_batchnorm_2d.1
$region0: #{group_batchnorm_2d.1}
  #allocation0 [shape = 'u32[]', space=smem, size = 0x4, offset = 0x4, fixed_abs, tag = 'smem constant byte address 0x4 - core index']
  #allocation1 [shape = 'u32[72,128]{1,0:T(1,128)}', space=vmem, size = 0x9000, scoped, tag = 'internal scratch']
  %s0 = inlined_call_operand.vmem [shape: f32[2,16,512], index: 0, kind: input, shape index: {}]
  %s1 = inlined_call_operand.vmem [shape: f32[16,512], index: 1, kind: input, shape index: {}]
  %s2 = inlined_call_operand.vmem [shape: f32[16,512], index: 2, kind: input, shape index: {}]
  %s3 = inlined_call_operand.vmem [shape: f32[2,16,512], index: 3, kind: output, shape index: {}]
  %s4 = sld [smem:[#allocation0]]
  $region45: #{group_batchnorm_2d.1} parent=0
    _
  %s6 = ssub.s32 1, %s4
  %s7 = scalar_select 0, %s6, %s4
  loop: start=0, step=1, limit=4
  $region2: #{group_batchnorm_2d.1} parent=0 // loop_pre_header
    _
  $region3: #{group_batchnorm_2d.1} parent=0 // loop_header
    %s9 = sphi 0, %s13
    %p10 = scmp.ge.s32.totalorder %s9, 4
    %s16 = sphi 0, %s28
    %s17 = sphi 0, %s24
    %s18 = sphi 0, %s16
    %s19 = sphi 0, %s17
    %s20 = sphi 0, %s18
    %s21 = sphi 0, %s19
    %s33 = sphi 0, %s35
    %s36 = sphi 0, %s33
    %s37 = sphi 0, %s36
    %s53 = sphi 0, %s37
    %s59 = sphi 0, %s61
    %s62 = sphi 0, %s59
    %s63 = sphi 0, %s62
    %s79 = sphi 0, %s63
    %s85 = sphi 0, %s87
    %s88 = sphi 0, %s85
    %s89 = sphi 0, %s88
    %s105 = sphi 0, %s89
    %s113 = sphi 0, %s115
    %s116 = sphi 0, %s113
    %s117 = sphi 0, %s116
    %s133 = sphi 0, %s117
  $region4: #{group_batchnorm_2d.1} parent=0 // loop_header_branch
    %12 = sbr.rel (%p10) target = $region8
  $region5: #{group_batchnorm_2d.1} parent=0 // loop_body
    %s14 = ssub.s32 %s9, 1
    %s15 = ssub.s32 %s9, 2
    %s22 = sadd.s32 1, %s17
    %p23 = scmp.ge.s32.totalorder %s22, 1
    %s24 = scalar_select %p23, 0, %s22
    %s25 = sadd.s32 1, %s16
    %s26 = scalar_select %p23, %s25, %s16
    %p27 = scmp.ge.s32.totalorder %s26, 2
    %s28 = scalar_select %p27, 0, %s26
    %s29 = ssub.s32 %s16, %s28
    %s30 = ssub.s32 %s17, %s24
    %s31 = sor.u32 %s29, %s30
    %p32 = scmp.eq.s32.totalorder %s31, 0
    %s34 = sadd.s32 %s33, 1
    %s35 = scalar_select %p32, %s33, %s34
    %p38 = pneg %p32
    %p39 = scmp.eq.s32.totalorder %s9, 1
    %p40 = por %p38, %p39
    %p41 = scmp.ne.s32.totalorder %s33, %s36
    %p42 = scmp.eq.s32.totalorder %s9, 0
    %p43 = por %p41, %p42
    %p44 = scmp.ne.s32.totalorder %s33, %s36
    %p45 = scmp.eq.s32.totalorder %s14, 1
    %p46 = por %p44, %p45
    %p47 = scmp.ne.s32.totalorder %s36, %s37
    %p48 = scmp.eq.s32.totalorder %s14, 0
    %p49 = por %p47, %p48
    %p50 = scmp.ne.s32.totalorder %s36, %s37
    %p51 = scmp.eq.s32.totalorder %s15, 1
    %p52 = por %p50, %p51
    %p54 = scmp.ne.s32.totalorder %s37, %s53
    %p55 = scmp.eq.s32.totalorder %s15, 0
    %p56 = por %p54, %p55
    %s57 = ssub.s32 %s17, %s24
    %p58 = scmp.eq.s32.totalorder %s57, 0
    %s60 = sadd.s32 %s59, 1
    %s61 = scalar_select %p58, %s59, %s60
    %p64 = pneg %p58
    %p65 = scmp.eq.s32.totalorder %s9, 1
    %p66 = por %p64, %p65
    %p67 = scmp.ne.s32.totalorder %s59, %s62
    %p68 = scmp.eq.s32.totalorder %s9, 0
    %p69 = por %p67, %p68
    %p70 = scmp.ne.s32.totalorder %s59, %s62
    %p71 = scmp.eq.s32.totalorder %s14, 1
    %p72 = por %p70, %p71
    %p73 = scmp.ne.s32.totalorder %s62, %s63
    %p74 = scmp.eq.s32.totalorder %s14, 0
    %p75 = por %p73, %p74
    %p76 = scmp.ne.s32.totalorder %s62, %s63
    %p77 = scmp.eq.s32.totalorder %s15, 1
    %p78 = por %p76, %p77
    %p80 = scmp.ne.s32.totalorder %s63, %s79
    %p81 = scmp.eq.s32.totalorder %s15, 0
    %p82 = por %p80, %p81
    %s83 = ssub.s32 %s17, %s24
    %p84 = scmp.eq.s32.totalorder %s83, 0
    %s86 = sadd.s32 %s85, 1
    %s87 = scalar_select %p84, %s85, %s86
    %p90 = pneg %p84
    %p91 = scmp.eq.s32.totalorder %s9, 1
    %p92 = por %p90, %p91
    %p93 = scmp.ne.s32.totalorder %s85, %s88
    %p94 = scmp.eq.s32.totalorder %s9, 0
    %p95 = por %p93, %p94
    %p96 = scmp.ne.s32.totalorder %s85, %s88
    %p97 = scmp.eq.s32.totalorder %s14, 1
    %p98 = por %p96, %p97
    %p99 = scmp.ne.s32.totalorder %s88, %s89
    %p100 = scmp.eq.s32.totalorder %s14, 0
    %p101 = por %p99, %p100
    %p102 = scmp.ne.s32.totalorder %s88, %s89
    %p103 = scmp.eq.s32.totalorder %s15, 1
    %p104 = por %p102, %p103
    %p106 = scmp.ne.s32.totalorder %s89, %s105
    %p107 = scmp.eq.s32.totalorder %s15, 0
    %p108 = por %p106, %p107
    %s109 = ssub.s32 %s16, %s28
    %s110 = ssub.s32 %s17, %s24
    %s111 = sor.u32 %s109, %s110
    %p112 = scmp.eq.s32.totalorder %s111, 0
    %s114 = sadd.s32 %s113, 1
    %s115 = scalar_select %p112, %s113, %s114
    %p118 = pneg %p112
    %p119 = scmp.eq.s32.totalorder %s9, 1
    %p120 = por %p118, %p119
    %p121 = scmp.ne.s32.totalorder %s113, %s116
    %p122 = scmp.eq.s32.totalorder %s9, 0
    %p123 = por %p121, %p122
    %p124 = scmp.ne.s32.totalorder %s113, %s116
    %p125 = scmp.eq.s32.totalorder %s14, 1
    %p126 = por %p124, %p125
    %p127 = scmp.ne.s32.totalorder %s116, %s117
    %p128 = scmp.eq.s32.totalorder %s14, 0
    %p129 = por %p127, %p128
    %p130 = scmp.ne.s32.totalorder %s116, %s117
    %p131 = scmp.eq.s32.totalorder %s15, 1
    %p132 = por %p130, %p131
    %p134 = scmp.ne.s32.totalorder %s117, %s133
    %p135 = scmp.eq.s32.totalorder %s15, 0
    %p136 = por %p134, %p135
    %p137 = scmp.le.s32.totalorder 1, %s9
    %p138 = scmp.lt.s32.totalorder %s9, 3
    %p139 = pnand %p137, %p138
    %p140 = pneg %p139
    // Predicated region
    $region9: #{group_batchnorm_2d.1} parent=5 // pred_check
      _
    $region10: #{group_batchnorm_2d.1} parent=5 // pred_check_branch
      %142 = sbr.rel (%p139) target = $region12
    $region11: #{group_batchnorm_2d.1} parent=5 // pred_region
      %s143 = ssub.s32 %s9, 1
      // Predicated region
      $region13: #{group_batchnorm_2d.1} parent=11 // pred_check
        %p144 = pneg %p75
      $region14: #{group_batchnorm_2d.1} parent=11 // pred_check_branch
        %146 = sbr.rel (%p144) target = $region16
      $region15: #{group_batchnorm_2d.1} parent=11 // pred_region
        %s147 = smul.u32 2, %s19
        %p148 = scmp.lt.s32.totalorder %s147, 1
        %s149 = scalar_select %p148, %s147, 1
        %s150 = smul.addr %s149, 4
        %s151 = smul.addr %s150, 8
        %s152 = scalar_lea.vmem %s1, %s151
        %s153 = smul.u32 2, %s19
      $region16: #{group_batchnorm_2d.1} parent=11 // pred_fallthru
        _
      // Predicated region
      $region17: #{group_batchnorm_2d.1} parent=11 // pred_check
        %p154 = pneg %p101
      $region18: #{group_batchnorm_2d.1} parent=11 // pred_check_branch
        %156 = sbr.rel (%p154) target = $region20
      $region19: #{group_batchnorm_2d.1} parent=11 // pred_region
        %s157 = smul.u32 2, %s19
        %p158 = scmp.lt.s32.totalorder %s157, 1
        %s159 = scalar_select %p158, %s157, 1
        %s160 = smul.addr %s159, 4
        %s161 = smul.addr %s160, 8
        %s162 = scalar_lea.vmem %s2, %s161
        %s163 = smul.u32 2, %s19
      $region20: #{group_batchnorm_2d.1} parent=11 // pred_fallthru
        _
    $region12: #{group_batchnorm_2d.1} parent=5 // pred_fallthru
      _
    %p164 = scmp.lt.s32.totalorder %s9, 2
    // Predicated region
    $region21: #{group_batchnorm_2d.1} parent=5 // pred_check
      %p165 = pneg %p164
    $region22: #{group_batchnorm_2d.1} parent=5 // pred_check_branch
      %167 = sbr.rel (%p165) target = $region24
    $region23: #{group_batchnorm_2d.1} parent=5 // pred_region
      // Predicated region
      $region25: #{group_batchnorm_2d.1} parent=23 // pred_check
        %p168 = pneg %p43
      $region26: #{group_batchnorm_2d.1} parent=23 // pred_check_branch
        %170 = sbr.rel (%p168) target = $region28
      $region27: #{group_batchnorm_2d.1} parent=23 // pred_region
        %s171 = smul.u32 2, %s17
        %p172 = scmp.lt.s32.totalorder %s16, 1
        %s173 = scalar_select %p172, %s16, 1
        %p174 = scmp.lt.s32.totalorder %s171, 1
        %s175 = scalar_select %p174, %s171, 1
        %s176 = smul.addr %s175, 4
        %s177 = smul.addr %s173, 8
        %s178 = sadd.s32 %s176, %s177
        %s179 = smul.addr %s178, 8
        %s180 = scalar_lea.vmem %s0, %s179
        %s181 = smul.u32 2, %s17
      $region28: #{group_batchnorm_2d.1} parent=23 // pred_fallthru
        _
    $region24: #{group_batchnorm_2d.1} parent=5 // pred_fallthru
      _
    %p182 = scmp.le.s32.totalorder 1, %s9
    %p183 = scmp.lt.s32.totalorder %s9, 3
    %p184 = pnand %p182, %p183
    %p185 = pneg %p184
    // Predicated region
    $region29: #{group_batchnorm_2d.1} parent=5 // pred_check
      _
    $region30: #{group_batchnorm_2d.1} parent=5 // pred_check_branch
      %187 = sbr.rel (%p184) target = $region32
    $region31: #{group_batchnorm_2d.1} parent=5 // pred_region
      %s188 = ssub.s32 %s9, 1
      %s189 = smul.u32 2, %s19
      %p190 = scmp.lt.s32.totalorder %s18, 1
      %s191 = scalar_select %p190, %s18, 1
      %p192 = scmp.lt.s32.totalorder %s189, 1
      %s193 = scalar_select %p192, %s189, 1
      %s194 = smul.addr %s193, 4
      %s195 = smul.addr %s191, 8
      %s196 = sadd.s32 %s194, %s195
      %s197 = smul.addr %s196, 8
      %s198 = scalar_lea.vmem %s0, %s197
      %p199 = pneg %p49
      %p200 = pneg %p46
      %s201 = smul.u32 2, %s19
      %p202 = scmp.lt.s32.totalorder %s201, 1
      %s203 = scalar_select %p202, %s201, 1
      %s204 = smul.addr %s203, 4
      %s205 = smul.addr %s204, 8
      %s206 = scalar_lea.vmem %s1, %s205
      %p207 = pneg %p75
      %p208 = pneg %p72
      %s209 = smul.u32 2, %s19
      %p210 = scmp.lt.s32.totalorder %s209, 1
      %s211 = scalar_select %p210, %s209, 1
      %s212 = smul.addr %s211, 4
      %s213 = smul.addr %s212, 8
      %s214 = scalar_lea.vmem %s2, %s213
      %p215 = pneg %p101
      %p216 = pneg %p98
      %p217 = pneg %p129
      %p218 = pneg %p126
      %s219 = smul.u32 2, %s19
      %p220 = scmp.lt.s32.totalorder %s18, 1
      %s221 = scalar_select %p220, %s18, 1
      %p222 = scmp.lt.s32.totalorder %s219, 1
      %s223 = scalar_select %p222, %s219, 1
      %s224 = smul.addr %s223, 4
      %s225 = smul.addr %s221, 8
      %s226 = sadd.s32 %s224, %s225
      %s227 = smul.addr %s226, 8
      %s228 = scalar_lea.vmem %s3, %s227
      %s229 = smul.u32 2, %s19
      %p230 = scmp.lt.s32.totalorder %s18, 1
      %s231 = scalar_select %p230, %s18, 1
      %p232 = scmp.lt.s32.totalorder %s229, 1
      %s233 = scalar_select %p232, %s229, 1
      %s234 = smul.addr %s233, 4
      %s235 = smul.addr %s231, 8
      %s236 = sadd.s32 %s234, %s235
      %s237 = smul.addr %s236, 8
      %s238 = scalar_lea.vmem %s0, %s237
      %s239 = smul.u32 2, %s19
      %s240 = smul.u32 2, %s19
      %p241 = scmp.lt.s32.totalorder %s240, 1
      %s242 = scalar_select %p241, %s240, 1
      %s243 = smul.addr %s242, 4
      %s244 = smul.addr %s243, 8
      %s245 = scalar_lea.vmem %s1, %s244
      %s246 = smul.u32 2, %s19
      %s247 = smul.u32 2, %s19
      %p248 = scmp.lt.s32.totalorder %s247, 1
      %s249 = scalar_select %p248, %s247, 1
      %s250 = smul.addr %s249, 4
      %s251 = smul.addr %s250, 8
      %s252 = scalar_lea.vmem %s2, %s251
      %s253 = smul.u32 2, %s19
      %s254 = smul.u32 2, %s19
      %p255 = scmp.lt.s32.totalorder %s18, 1
      %s256 = scalar_select %p255, %s18, 1
      %p257 = scmp.lt.s32.totalorder %s254, 1
      %s258 = scalar_select %p257, %s254, 1
      %s259 = smul.addr %s258, 4
      %s260 = smul.addr %s256, 8
      %s261 = sadd.s32 %s259, %s260
      %s262 = smul.addr %s261, 8
      %s263 = scalar_lea.vmem %s3, %s262
      %s264 = smul.u32 2, %s19
      %v265 = vld [vmem:[%s238] sm:$0xff]
      %v266 = vld [vmem:[%s238 + $0x8] sm:$0xff]
      %v267 = vld [vmem:[%s238 + $0x10] sm:$0xff]
      %v268 = vld [vmem:[%s238 + $0x18] sm:$0xff]
      %v269 = vld [vmem:[%s238 + $0x20] sm:$0xff]
      %v270 = vld [vmem:[%s238 + $0x28] sm:$0xff]
      %v271 = vld [vmem:[%s238 + $0x30] sm:$0xff]
      %v272 = vld [vmem:[%s238 + $0x38] sm:$0xff]
      %v273 = vadd.f32 %v265, %v266
      %v274 = vadd.f32 %v273, %v267
      %v275 = vadd.f32 %v274, %v268
      %276 = vadd.xlane.f32.xlu0 %v275
      %v277 = vpop.xlane.xlu0 %276
      %v278 = vadd.f32 %v269, %v270
      %v279 = vadd.f32 %v278, %v271
      %v280 = vadd.f32 %v279, %v272
      %281 = vadd.xlane.f32.xlu0 %v280
      %v282 = vpop.xlane.xlu0 %281
      %v283 = vrcp.pop 512.0
      %v284 = vmul.f32 512.0, %v283
      %v285 = vsub.f32 1.0, %v284
      %v286 = vmul.f32 %v283, %v285
      %v287 = vadd.f32 %v283, %v286
      %vm288 = vweird.f32 %v283
      %v289 = vsel %vm288, %v283, %v287
      %v290 = vmul.f32 %v277, %v289
      %v291 = vmul.f32 %v282, %v289
      %v292 = vsub.f32 %v265, %v290
      %v293 = vsub.f32 %v266, %v290
      %v294 = vsub.f32 %v267, %v290
      %v295 = vsub.f32 %v268, %v290
      %v296 = vsub.f32 %v269, %v291
      %v297 = vsub.f32 %v270, %v291
      %v298 = vsub.f32 %v271, %v291
      %v299 = vsub.f32 %v272, %v291
      %v300 = vmul.f32 %v292, %v292
      %v301 = vmul.f32 %v293, %v293
      %v302 = vmul.f32 %v294, %v294
      %v303 = vmul.f32 %v295, %v295
      %v304 = vmul.f32 %v296, %v296
      %v305 = vmul.f32 %v297, %v297
      %v306 = vmul.f32 %v298, %v298
      %v307 = vmul.f32 %v299, %v299
      %v308 = vadd.f32 %v300, %v301
      %v309 = vadd.f32 %v308, %v302
      %v310 = vadd.f32 %v309, %v303
      %311 = vadd.xlane.f32.xlu0 %v310
      %v312 = vpop.xlane.xlu0 %311
      %v313 = vadd.f32 %v304, %v305
      %v314 = vadd.f32 %v313, %v306
      %v315 = vadd.f32 %v314, %v307
      %316 = vadd.xlane.f32.xlu0 %v315
      %v317 = vpop.xlane.xlu0 %316
      %v318 = vmul.f32 %v312, 0.0019569471
      %v319 = vmul.f32 %v317, 0.0019569471
      %v320 = vrsqrt.pop %v318
      %v321 = vmul.f32 %v320, %v318
      %v322 = vmul.f32 %v321, %v320
      %v323 = vmul.f32 0.5, %v322
      %v324 = vsub.f32 1.5, %v323
      %v325 = vmul.f32 %v320, %v324
      %v326 = vmul.f32 %v318, %v325
      %vm327 = vcmp.eq.f32.partialorder %v318, inf
      %v328 = vsel %vm327, %v318, %v326
      %vm329 = vcmp.eq.f32.partialorder %v318, 0.0
      %v330 = vand.u32 %v318, 2147483648
      %v331 = vsel %vm329, %v330, %v328
      %v332 = vrsqrt.pop %v319
      %v333 = vmul.f32 %v332, %v319
      %v334 = vmul.f32 %v333, %v332
      %v335 = vmul.f32 0.5, %v334
      %v336 = vsub.f32 1.5, %v335
      %v337 = vmul.f32 %v332, %v336
      %v338 = vmul.f32 %v319, %v337
      %vm339 = vcmp.eq.f32.partialorder %v319, inf
      %v340 = vsel %vm339, %v319, %v338
      %vm341 = vcmp.eq.f32.partialorder %v319, 0.0
      %v342 = vand.u32 %v319, 2147483648
      %v343 = vsel %vm341, %v342, %v340
      %v344 = vadd.f32 %v331, 1e-10
      %v345 = vadd.f32 %v343, 1e-10
      %v346 = vrcp.pop %v344
      %v347 = vmul.f32 %v344, %v346
      %v348 = vsub.f32 1.0, %v347
      %v349 = vmul.f32 %v346, %v348
      %v350 = vadd.f32 %v346, %v349
      %vm351 = vweird.f32 %v344
      %vm352 = vweird.f32 %v346
      %vm353 = vmor %vm351, %vm352
      %v354 = vsel %vm353, %v346, %v350
      %v355 = vand.u32 2147483647, %v344
      %vm356 = vcmp.eq.f32.partialorder %v355, 8.507059e+37
      %v357 = vand.u32 %v344, 2147483648
      %v358 = vor.u32 1.1754944e-38, %v357
      %v359 = vsel %vm356, %v358, %v354
      %v360 = vmul.f32 1.0, %v359
      %v361 = vrcp.pop %v345
      %v362 = vmul.f32 %v345, %v361
      %v363 = vsub.f32 1.0, %v362
      %v364 = vmul.f32 %v361, %v363
      %v365 = vadd.f32 %v361, %v364
      %vm366 = vweird.f32 %v345
      %vm367 = vweird.f32 %v361
      %vm368 = vmor %vm366, %vm367
      %v369 = vsel %vm368, %v361, %v365
      %v370 = vand.u32 2147483647, %v345
      %vm371 = vcmp.eq.f32.partialorder %v370, 8.507059e+37
      %v372 = vand.u32 %v345, 2147483648
      %v373 = vor.u32 1.1754944e-38, %v372
      %v374 = vsel %vm371, %v373, %v369
      %v375 = vmul.f32 1.0, %v374
      %v376 = vmul.f32 %v292, %v360
      %v377 = vmul.f32 %v293, %v360
      %v378 = vmul.f32 %v294, %v360
      %v379 = vmul.f32 %v295, %v360
      %v380 = vmul.f32 %v296, %v375
      %v381 = vmul.f32 %v297, %v375
      %v382 = vmul.f32 %v298, %v375
      %v383 = vmul.f32 %v299, %v375
      %v384 = vld [vmem:[%s245] sm:$0xff]
      %v385 = vld [vmem:[%s245 + $0x8] sm:$0xff]
      %v386 = vld [vmem:[%s245 + $0x10] sm:$0xff]
      %v387 = vld [vmem:[%s245 + $0x18] sm:$0xff]
      %v388 = vld [vmem:[%s245 + $0x20] sm:$0xff]
      %v389 = vld [vmem:[%s245 + $0x28] sm:$0xff]
      %v390 = vld [vmem:[%s245 + $0x30] sm:$0xff]
      %v391 = vld [vmem:[%s245 + $0x38] sm:$0xff]
      %v392 = vmul.f32 %v376, %v384
      %v393 = vmul.f32 %v377, %v385
      %v394 = vmul.f32 %v378, %v386
      %v395 = vmul.f32 %v379, %v387
      %v396 = vmul.f32 %v380, %v388
      %v397 = vmul.f32 %v381, %v389
      %v398 = vmul.f32 %v382, %v390
      %v399 = vmul.f32 %v383, %v391
      %v400 = vld [vmem:[%s252] sm:$0xff]
      %v401 = vld [vmem:[%s252 + $0x8] sm:$0xff]
      %v402 = vld [vmem:[%s252 + $0x10] sm:$0xff]
      %v403 = vld [vmem:[%s252 + $0x18] sm:$0xff]
      %v404 = vld [vmem:[%s252 + $0x20] sm:$0xff]
      %v405 = vld [vmem:[%s252 + $0x28] sm:$0xff]
      %v406 = vld [vmem:[%s252 + $0x30] sm:$0xff]
      %v407 = vld [vmem:[%s252 + $0x38] sm:$0xff]
      %v408 = vadd.f32 %v392, %v400
      %v409 = vadd.f32 %v393, %v401
      %v410 = vadd.f32 %v394, %v402
      %v411 = vadd.f32 %v395, %v403
      %v412 = vadd.f32 %v396, %v404
      %v413 = vadd.f32 %v397, %v405
      %v414 = vadd.f32 %v398, %v406
      %v415 = vadd.f32 %v399, %v407
      %416 = vst [vmem:[%s263] sm:$0xff] %v408
      %417 = vst [vmem:[%s263 + $0x8] sm:$0xff] %v409
      %418 = vst [vmem:[%s263 + $0x10] sm:$0xff] %v410
      %419 = vst [vmem:[%s263 + $0x18] sm:$0xff] %v411
      %420 = vst [vmem:[%s263 + $0x20] sm:$0xff] %v412
      %421 = vst [vmem:[%s263 + $0x28] sm:$0xff] %v413
      %422 = vst [vmem:[%s263 + $0x30] sm:$0xff] %v414
      %423 = vst [vmem:[%s263 + $0x38] sm:$0xff] %v415
      %s424 = smul.u32 2, %s19
      %p425 = scmp.lt.s32.totalorder %s18, 1
      %s426 = scalar_select %p425, %s18, 1
      %p427 = scmp.lt.s32.totalorder %s424, 1
      %s428 = scalar_select %p427, %s424, 1
      %s429 = smul.addr %s428, 4
      %s430 = smul.addr %s426, 8
      %s431 = sadd.s32 %s429, %s430
      %s432 = smul.addr %s431, 8
      %s433 = scalar_lea.vmem %s3, %s432
      // Predicated region
      $region33: #{group_batchnorm_2d.1} parent=31 // pred_check
        %p434 = pneg %p126
      $region34: #{group_batchnorm_2d.1} parent=31 // pred_check_branch
        %436 = sbr.rel (%p434) target = $region36
      $region35: #{group_batchnorm_2d.1} parent=31 // pred_region
        %s437 = smul.u32 2, %s19
      $region36: #{group_batchnorm_2d.1} parent=31 // pred_fallthru
        _
    $region32: #{group_batchnorm_2d.1} parent=5 // pred_fallthru
      _
    %p438 = scmp.le.s32.totalorder 2, %s9
    // Predicated region
    $region37: #{group_batchnorm_2d.1} parent=5 // pred_check
      %p439 = pneg %p438
    $region38: #{group_batchnorm_2d.1} parent=5 // pred_check_branch
      %441 = sbr.rel (%p439) target = $region40
    $region39: #{group_batchnorm_2d.1} parent=5 // pred_region
      %s442 = ssub.s32 %s9, 2
      // Predicated region
      $region41: #{group_batchnorm_2d.1} parent=39 // pred_check
        %p443 = pneg %p132
      $region42: #{group_batchnorm_2d.1} parent=39 // pred_check_branch
        %445 = sbr.rel (%p443) target = $region44
      $region43: #{group_batchnorm_2d.1} parent=39 // pred_region
        %s446 = smul.u32 2, %s21
        %p447 = scmp.lt.s32.totalorder %s20, 1
        %s448 = scalar_select %p447, %s20, 1
        %p449 = scmp.lt.s32.totalorder %s446, 1
        %s450 = scalar_select %p449, %s446, 1
        %s451 = smul.addr %s450, 4
        %s452 = smul.addr %s448, 8
        %s453 = sadd.s32 %s451, %s452
        %s454 = smul.addr %s453, 8
        %s455 = scalar_lea.vmem %s3, %s454
      $region44: #{group_batchnorm_2d.1} parent=39 // pred_fallthru
        _
    $region40: #{group_batchnorm_2d.1} parent=5 // pred_fallthru
      _
  $region6: #{group_batchnorm_2d.1} parent=0 // loop_footer
    %s13 = sadd.s32 1, %s9
  $region7: #{group_batchnorm_2d.1} parent=0 // loop_footer_branch
    %8 = sbr.rel target = $region3
  $region8: #{group_batchnorm_2d.1} parent=0 // loop_exit
    _

</llo_original>
